<compile_context>
chip_gen: v7x
topology: tpu7x:2x2x1
jax: 0.10.0
libtpu: 0.0.40
codegen_flags: <defaults>
</compile_context>

<pallas_src>
import functools

import jax
import jax.numpy as jnp
from jax.experimental import pallas as pl
from jax.experimental.pallas import tpu as pltpu


def _round_up(x, m):
    return ((x + m - 1) // m) * m


def _node_apply_kernel(x_ref, w_ref, b_ref, o_ref):
    """One node-tile: o = relu(x @ W + b).

    x_ref: (tm, D_in)    VMEM (bf16 or f32)
    w_ref: (D_in, D_out) VMEM (bf16 or f32, grid-invariant, single-buffered)
    b_ref: (1, D_out)    VMEM (f32, grid-invariant, single-buffered)
    o_ref: (tm, D_out)   VMEM (output dtype)
    """
    h = jnp.dot(x_ref[...], w_ref[...], preferred_element_type=jnp.float32)
    h = h + b_ref[...].astype(jnp.float32)   # bias broadcast over node rows, f32
    h = jnp.maximum(h, 0.0)                  # activation = ReLU (F.relu in GCN)
    o_ref[...] = h.astype(o_ref.dtype)


@functools.partial(jax.jit, static_argnames=("tm", "use_bf16"))
def node_apply(x, w, b, *, tm=512, use_bf16=True):
    """h_out = relu(x @ w + b) via pallas_call, tiled over the node axis.

    tm: node-tile size. Keep it large (512-1024) for real graphs; on v7x also
        keep n // tm >= 2 so both TensorCores get work from the "parallel" axis.
    """
    n, d_in = x.shape
    d_out = w.shape[1]
    out_dtype = x.dtype

    # Effective tile: never bigger than the (sublane-rounded) node count,
    # always a multiple of 8 (sublane constraint on the second-to-last dim).
    tm_eff = _round_up(min(tm, _round_up(n, 8)), 8)

    # Ragged N: pad the node axis up to a multiple of the tile. Padded rows
    # compute relu(0 @ W + b) and are sliced off below.
    n_pad = _round_up(n, tm_eff)
    if n_pad != n:
        x = jnp.pad(x, ((0, n_pad - n), (0, 0)))

    # bf16 inputs halve HBM traffic on this memory-bound kernel; accumulation
    # and the bias/ReLU epilogue stay f32 (also keeps the v5e VPU path legal).
    in_dtype = jnp.bfloat16 if use_bf16 else x.dtype
    x_c = x.astype(in_dtype)
    w_c = w.astype(in_dtype)
    b_c = b.astype(jnp.float32)

    grid = (n_pad // tm_eff,)

    # VMEM budget: 2x buffered x tile + 2x buffered out tile + single-buffered
    # weight + bias, with 2x headroom; clamp to a range safe on v5e..v7x.
    in_bytes = jnp.dtype(in_dtype).itemsize
    out_bytes = jnp.dtype(out_dtype).itemsize
    est = (2 * tm_eff * d_in * in_bytes
           + 2 * tm_eff * d_out * out_bytes
           + d_in * d_out * in_bytes
           + d_out * 4)
    vmem_limit = int(min(max(2 * est, 16 * 1024 * 1024), 48 * 1024 * 1024))

    out = pl.pallas_call(
        _node_apply_kernel,
        out_shape=jax.ShapeDtypeStruct((n_pad, d_out), out_dtype),
        grid_spec=pltpu.PrefetchScalarGridSpec(
            num_scalar_prefetch=0,
            grid=grid,
            in_specs=[
                # node tile: double-buffered (default) and streamed over the grid
                pl.BlockSpec((tm_eff, d_in), lambda i: (i, 0)),
                # full weight: grid-invariant -> single buffer
                pl.BlockSpec((d_in, d_out), lambda i: (0, 0),
                             pipeline_mode=pl.Buffered(1)),
                # full bias: grid-invariant -> single buffer
                pl.BlockSpec((1, d_out), lambda i: (0, 0),
                             pipeline_mode=pl.Buffered(1)),
            ],
            out_specs=pl.BlockSpec((tm_eff, d_out), lambda i: (i, 0)),
        ),
        compiler_params=pltpu.CompilerParams(
            dimension_semantics=("parallel",),   # node axis shards across TCs
            vmem_limit_bytes=vmem_limit,
        ),
    )(x_c, w_c, b_c)

    # TODO(synk): for D_in >~ 2048 add a K grid axis ("arbitrary", last) with an
    # f32 VMEM accumulator so the whole weight need not be VMEM-resident.
    return out[:n] if n_pad != n else out


if __name__ == "__main__":
    # Small GCN-ish shapes: 200 nodes (ragged on purpose), 128 in, 128 out.
    N, D_IN, D_OUT = 200, 128, 128

    key = jax.random.PRNGKey(0)
    k_x, k_w, k_b = jax.random.split(key, 3)

    # nn.Linear-style init: U[-1/sqrt(in), 1/sqrt(in)].
    bound = 1.0 / jnp.sqrt(jnp.float32(D_IN))
    x = jax.random.normal(k_x, (N, D_IN), dtype=jnp.float32)
    w = jax.random.uniform(k_w, (D_IN, D_OUT), dtype=jnp.float32,
                           minval=-bound, maxval=bound)
    b = jax.random.uniform(k_b, (1, D_OUT), dtype=jnp.float32,
                           minval=-bound, maxval=bound)

    # Run with the production default tile and with a small tile that forces
    # ragged padding + a multi-step grid.
    out_default = jax.block_until_ready(node_apply(x, w, b))
    out_small = jax.block_until_ready(node_apply(x, w, b, tm=128))

    # References: exact path (bf16-cast inputs, f32 accumulate) and pure f32.
    x_bf = x.astype(jnp.bfloat16).astype(jnp.float32)
    w_bf = w.astype(jnp.bfloat16).astype(jnp.float32)
    ref_bf16 = jnp.maximum(x_bf @ w_bf + b, 0.0)
    ref_f32 = jnp.maximum(x @ w + b, 0.0)

    for out in (out_default, out_small):
        assert out.shape == (N, D_OUT)
        assert jnp.allclose(out, ref_bf16, atol=1e-3, rtol=1e-3), \
            "mismatch vs bf16-path reference"
        assert jnp.allclose(out, ref_f32, atol=3e-2, rtol=3e-2), \
            "mismatch vs f32 reference"

    print("KERNEL_OK")
</pallas_src>

<mosaic_0001>
module attributes {stable_mosaic.version = 11 : i64} {
  func.func @_node_apply_kernel(%arg0: i32, %arg1: memref<200x128xbf16, #tpu.memory_space<vmem>>, %arg2: memref<128x128xbf16, #tpu.memory_space<vmem>>, %arg3: memref<1x128xf32, #tpu.memory_space<vmem>>, %arg4: memref<200x128xf32, #tpu.memory_space<vmem>>) attributes {dimension_semantics = [#tpu.dimension_semantics<parallel>], iteration_bounds = array<i64: 1>, scalar_prefetch = 0 : i64, scratch_operands = 0 : i64, tpu.core_type = #tpu.core_type<tc>, window_params = [{transform_indices = @transform_0, window_bounds = array<i64: 200, 128>}, {pipeline_mode = #tpu.pipeline_mode<synchronous>, transform_indices = @transform_1, window_bounds = array<i64: 128, 128>}, {pipeline_mode = #tpu.pipeline_mode<synchronous>, transform_indices = @transform_2, window_bounds = array<i64: 1, 128>}, {transform_indices = @transform_3, window_bounds = array<i64: 200, 128>}]} {
    %c0 = arith.constant 0 : index
    %c0_0 = arith.constant 0 : index
    %0 = vector.load %arg1[%c0, %c0_0] : memref<200x128xbf16, #tpu.memory_space<vmem>>, vector<200x128xbf16>
    %c0_1 = arith.constant 0 : index
    %c0_2 = arith.constant 0 : index
    %1 = vector.load %arg2[%c0_1, %c0_2] : memref<128x128xbf16, #tpu.memory_space<vmem>>, vector<128x128xbf16>
    %cst = arith.constant dense<0.000000e+00> : vector<200x128xf32>
    %2 = tpu.matmul %0, %1, %cst {dimension_numbers = #tpu.dot_dimension_numbers<[1], [0], [0], [1], [0, 0, 1, 1], [], []>} : vector<200x128xbf16>, vector<128x128xbf16>, vector<200x128xf32> -> vector<200x128xf32>
    %c0_3 = arith.constant 0 : index
    %c0_4 = arith.constant 0 : index
    %3 = vector.load %arg3[%c0_3, %c0_4] : memref<1x128xf32, #tpu.memory_space<vmem>>, vector<1x128xf32>
    %4 = vector.broadcast %3 : vector<1x128xf32> to vector<200x128xf32>
    %5 = arith.addf %2, %4 : vector<200x128xf32>
    %cst_5 = arith.constant 0.000000e+00 : f32
    %6 = vector.broadcast %cst_5 : f32 to vector<200x128xf32>
    %7 = arith.maximumf %5, %6 : vector<200x128xf32>
    %c0_6 = arith.constant 0 : index
    %c0_7 = arith.constant 0 : index
    %8 = vector.load %arg4[%c0_6, %c0_7] : memref<200x128xf32, #tpu.memory_space<vmem>>, vector<200x128xf32>
    tpu.vector_store %arg4[%c0_6, %c0_7], %7 {strides = array<i32>} : memref<200x128xf32, #tpu.memory_space<vmem>>, vector<200x128xf32>,
    return
  }
  func.func @transform_0(%arg0: i32) -> (i32, i32) {
    %c0_i32 = arith.constant 0 : i32
    %c0_i32_0 = arith.constant 0 : i32
    return %arg0, %c0_i32 : i32, i32
  }
  func.func @transform_1(%arg0: i32) -> (i32, i32) {
    %c0_i32 = arith.constant 0 : i32
    %c0_i32_0 = arith.constant 0 : i32
    %c0_i32_1 = arith.constant 0 : i32
    return %c0_i32, %c0_i32_0 : i32, i32
  }
  func.func @transform_2(%arg0: i32) -> (i32, i32) {
    %c0_i32 = arith.constant 0 : i32
    %c0_i32_0 = arith.constant 0 : i32
    %c0_i32_1 = arith.constant 0 : i32
    return %c0_i32, %c0_i32_0 : i32, i32
  }
  func.func @transform_3(%arg0: i32) -> (i32, i32) {
    %c0_i32 = arith.constant 0 : i32
    %c0_i32_0 = arith.constant 0 : i32
    return %arg0, %c0_i32 : i32, i32
  }
}

</mosaic_0001>

<llo_original>
// kernel: node_apply.1
$region0: #{node_apply.1}
  #allocation0 [shape = 'u32[]', space=smem, size = 0x4, offset = 0x4, fixed_abs, tag = 'smem constant byte address 0x4 - core index']
  #allocation1 [shape = 'u32[144,128]{1,0:T(1,128)}', space=vmem, size = 0x12000, scoped, tag = 'internal scratch']
  %s0 = inlined_call_operand.vmem [shape: bf16[200,128], index: 0, kind: input, shape index: {}]
  %s1 = inlined_call_operand.vmem [shape: bf16[128,128], index: 1, kind: input, shape index: {}]
  %s2 = inlined_call_operand.vmem [shape: f32[1,128], index: 2, kind: input, shape index: {}]
  %s3 = inlined_call_operand.hbm [shape: f32[200,128], index: 3, kind: output, shape index: {}]
  %s4 = sld [smem:[#allocation0]]
  $region22: #{node_apply.1} parent=0
    _
  %s6 = ssub.s32 1, %s4
  %s7 = scalar_select 0, %s6, %s4
  $region1: #{node_apply.1} parent=0
    #allocation2 [shape = 'u8[102400]{0}', space=vmem, size = 0x19000, scoped, tag = 'output window, operand 0, single buffered']
    #allocation3 [shape = 's32[1]{0}', space=sflag, size = 0x4, scoped, tag = 'scoped memory for node_apply.1']
    %8 = vsyncpa [#allocation3], 0
    // Predicated region
    $region2: #{node_apply.1} parent=1 // pred_check
      _
    $region3: #{node_apply.1} parent=1 // pred_check_branch
      %10 = sbr.rel (0) target = $region5
    $region4: #{node_apply.1} parent=1 // pred_region
      _
    $region5: #{node_apply.1} parent=1 // pred_fallthru
      _
    // Predicated region
    $region6: #{node_apply.1} parent=1 // pred_check
      _
    $region7: #{node_apply.1} parent=1 // pred_check_branch
      %12 = sbr.rel (0) target = $region9
    $region8: #{node_apply.1} parent=1 // pred_region
      _
    $region9: #{node_apply.1} parent=1 // pred_fallthru
      _
    // Predicated region
    $region10: #{node_apply.1} parent=1 // pred_check
      _
    $region11: #{node_apply.1} parent=1 // pred_check_branch
      %14 = sbr.rel (0) target = $region13
    $region12: #{node_apply.1} parent=1 // pred_region
      _
    $region13: #{node_apply.1} parent=1 // pred_fallthru
      _
    %v16 = vld [vmem:[%s0] sm:$0xf]
    %v17 = vld [vmem:[%s0 + $0x4] sm:$0xf]
    %v18 = vld [vmem:[%s0 + $0x8] sm:$0xf]
    %v19 = vld [vmem:[%s0 + $0xc] sm:$0xf]
    %v20 = vld [vmem:[%s0 + $0x10] sm:$0xf]
    %v21 = vld [vmem:[%s0 + $0x14] sm:$0xf]
    %v22 = vld [vmem:[%s0 + $0x18] sm:$0xf]
    %v23 = vld [vmem:[%s0 + $0x1c] sm:$0xf]
    %v24 = vld [vmem:[%s0 + $0x20] sm:$0xf]
    %v25 = vld [vmem:[%s0 + $0x24] sm:$0xf]
    %v26 = vld [vmem:[%s0 + $0x28] sm:$0xf]
    %v27 = vld [vmem:[%s0 + $0x2c] sm:$0xf]
    %v28 = vld [vmem:[%s0 + $0x30] sm:$0xf]
    %v29 = vld [vmem:[%s0 + $0x34] sm:$0xf]
    %v30 = vld [vmem:[%s0 + $0x38] sm:$0xf]
    %v31 = vld [vmem:[%s0 + $0x3c] sm:$0xf]
    %v32 = vld [vmem:[%s0 + $0x40] sm:$0xf]
    %v33 = vld [vmem:[%s0 + $0x44] sm:$0xf]
    %v34 = vld [vmem:[%s0 + $0x48] sm:$0xf]
    %v35 = vld [vmem:[%s0 + $0x4c] sm:$0xf]
    %v36 = vld [vmem:[%s0 + $0x50] sm:$0xf]
    %v37 = vld [vmem:[%s0 + $0x54] sm:$0xf]
    %v38 = vld [vmem:[%s0 + $0x58] sm:$0xf]
    %v39 = vld [vmem:[%s0 + $0x5c] sm:$0xf]
    %v40 = vld [vmem:[%s0 + $0x60] sm:$0xf]
    %v41 = vld [vmem:[%s1] sm:$0xf]
    %v42 = vld [vmem:[%s1 + $0x4] sm:$0xf]
    %v43 = vld [vmem:[%s1 + $0x8] sm:$0xf]
    %v44 = vld [vmem:[%s1 + $0xc] sm:$0xf]
    %v45 = vld [vmem:[%s1 + $0x10] sm:$0xf]
    %v46 = vld [vmem:[%s1 + $0x14] sm:$0xf]
    %v47 = vld [vmem:[%s1 + $0x18] sm:$0xf]
    %v48 = vld [vmem:[%s1 + $0x1c] sm:$0xf]
    %v49 = vld [vmem:[%s1 + $0x20] sm:$0xf]
    %v50 = vld [vmem:[%s1 + $0x24] sm:$0xf]
    %v51 = vld [vmem:[%s1 + $0x28] sm:$0xf]
    %v52 = vld [vmem:[%s1 + $0x2c] sm:$0xf]
    %v53 = vld [vmem:[%s1 + $0x30] sm:$0xf]
    %v54 = vld [vmem:[%s1 + $0x34] sm:$0xf]
    %v55 = vld [vmem:[%s1 + $0x38] sm:$0xf]
    %v56 = vld [vmem:[%s1 + $0x3c] sm:$0xf]
    %v57 = vld [vmem:[%s2] sm:$0x1]
    %v59 = vlaneseq
    %v60 = vshrl.u32 %v59, 7
    %v61 = vsub.s32 0, %v60
    %v62 = vrot.slane %v57, %v61
    %v89 = vunpack.c.l.b16 %v16
    %v90 = vunpack.c.l.b16 %v17
    %v91 = vunpack.c.l.b16 %v18
    %v92 = vunpack.c.l.b16 %v19
    %v93 = vunpack.c.l.b16 %v20
    %v94 = vunpack.c.l.b16 %v21
    %v95 = vunpack.c.l.b16 %v22
    %v96 = vunpack.c.l.b16 %v23
    %v97 = vunpack.c.l.b16 %v24
    %v98 = vunpack.c.l.b16 %v25
    %v99 = vunpack.c.l.b16 %v26
    %v100 = vunpack.c.l.b16 %v27
    %v101 = vunpack.c.l.b16 %v28
    %v102 = vunpack.c.l.b16 %v29
    %v103 = vunpack.c.l.b16 %v30
    %v104 = vunpack.c.l.b16 %v31
    %v105 = vunpack.c.l.b16 %v32
    %v106 = vunpack.c.l.b16 %v33
    %v107 = vunpack.c.l.b16 %v34
    %v108 = vunpack.c.l.b16 %v35
    %v109 = vunpack.c.l.b16 %v36
    %v110 = vunpack.c.l.b16 %v37
    %v111 = vunpack.c.l.b16 %v38
    %v112 = vunpack.c.l.b16 %v39
    %v113 = vunpack.c.l.b16 %v40
    %v114 = vpack.c.b16 %v90, %v89
    %v115 = vpack.c.b16 %v92, %v91
    %v116 = vpack.c.b16 %v94, %v93
    %v117 = vpack.c.b16 %v96, %v95
    %v118 = vpack.c.b16 %v98, %v97
    %v119 = vpack.c.b16 %v100, %v99
    %v120 = vpack.c.b16 %v102, %v101
    %v121 = vpack.c.b16 %v104, %v103
    %v122 = vpack.c.b16 %v106, %v105
    %v123 = vpack.c.b16 %v108, %v107
    %v124 = vpack.c.b16 %v110, %v109
    %v125 = vpack.c.b16 %v112, %v111
    %v126 = vpack.c.b16 %v113, %v113
    %v156 = vunpack.c.l.b16 %v41
    %v157 = vunpack.c.l.b16 %v42
    %v158 = vunpack.c.l.b16 %v43
    %v159 = vunpack.c.l.b16 %v44
    %v160 = vunpack.c.l.b16 %v45
    %v161 = vunpack.c.l.b16 %v46
    %v162 = vunpack.c.l.b16 %v47
    %v163 = vunpack.c.l.b16 %v48
    %v164 = vunpack.c.l.b16 %v49
    %v165 = vunpack.c.l.b16 %v50
    %v166 = vunpack.c.l.b16 %v51
    %v167 = vunpack.c.l.b16 %v52
    %v168 = vunpack.c.l.b16 %v53
    %v169 = vunpack.c.l.b16 %v54
    %v170 = vunpack.c.l.b16 %v55
    %v171 = vunpack.c.l.b16 %v56
    %v172 = vpack.c.b16 %v157, %v156
    %v173 = vpack.c.b16 %v159, %v158
    %v174 = vpack.c.b16 %v161, %v160
    %v175 = vpack.c.b16 %v163, %v162
    %v176 = vpack.c.b16 %v165, %v164
    %v177 = vpack.c.b16 %v167, %v166
    %v178 = vpack.c.b16 %v169, %v168
    %v179 = vpack.c.b16 %v171, %v170
    %188 = vmatprep.subr.bf16.mxu0 0
    %189 = vmatpush1.bf16.msra.mxu0 %v172
    %190 = vmatprep.subr.bf16.mxu0 0
    %191 = vmatpush1.bf16.msra.mxu0 %v173
    %192 = vmatprep.subr.bf16.mxu0 0
    %193 = vmatpush1.bf16.msra.mxu0 %v174
    %194 = vmatprep.subr.bf16.mxu0 0
    %195 = vmatpush1.bf16.msra.mxu0 %v175
    %196 = vmatprep.subr.bf16.mxu0 0
    %197 = vmatpush1.bf16.msra.mxu0 %v176
    %198 = vmatprep.subr.bf16.mxu0 0
    %199 = vmatpush1.bf16.msra.mxu0 %v177
    %200 = vmatprep.subr.bf16.mxu0 0
    %201 = vmatpush1.bf16.msra.mxu0 %v178
    %202 = vmatprep.subr.bf16.mxu0 0
    %203 = vmatpush1.bf16.msra.mxu0 %v179
    %204 = vmatprep.subr.bf16.mxu0 0
    %205 = vmatpush1.bf16.msra.mxu0 0
    %206 = vmatprep.subr.bf16.mxu0 0
    %207 = vmatpush1.bf16.msra.mxu0 0
    %208 = vmatprep.subr.bf16.mxu0 0
    %209 = vmatpush1.bf16.msra.mxu0 0
    %210 = vmatprep.subr.bf16.mxu0 0
    %211 = vmatpush1.bf16.msra.mxu0 0
    %212 = vmatprep.subr.bf16.mxu0 0
    %213 = vmatpush1.bf16.msra.mxu0 0
    %214 = vmatprep.subr.bf16.mxu0 0
    %215 = vmatpush1.bf16.msra.mxu0 0
    %216 = vmatprep.subr.bf16.mxu0 0
    %217 = vmatpush1.bf16.msra.mxu0 0
    %218 = vmatprep.subr.bf16.mxu0 0
    %219 = vmatpush1.bf16.msra.mxu0 0
    %220 = vmatprep.mubr.bf16.mxu0 0
    %221 = vmatmul.mubr.bf16.gmra.mrb[0].mxu0 %v114
    %v222 = vpop.f32.mrb[0].mxu0
    %v223 = vadd.f32 %v62, %v222
    %v224 = vpop.f32.mrb[0].mxu0
    %v225 = vpop.f32.mrb[0].mxu0
    %v226 = vadd.f32 %v62, %v225
    %v227 = vpop.f32.mrb[0].mxu0
    %228 = vmatprep.mubr.bf16.mxu0 0
    %229 = vmatmul.mubr.bf16.gmra.mrb[0].mxu0 %v115
    %v230 = vpop.f32.mrb[0].mxu0
    %v231 = vadd.f32 %v62, %v230
    %v232 = vpop.f32.mrb[0].mxu0
    %v233 = vpop.f32.mrb[0].mxu0
    %v234 = vadd.f32 %v62, %v233
    %v235 = vpop.f32.mrb[0].mxu0
    %236 = vmatprep.mubr.bf16.mxu0 0
    %237 = vmatmul.mubr.bf16.gmra.mrb[0].mxu0 %v116
    %v238 = vpop.f32.mrb[0].mxu0
    %v239 = vadd.f32 %v62, %v238
    %v240 = vpop.f32.mrb[0].mxu0
    %v241 = vpop.f32.mrb[0].mxu0
    %v242 = vadd.f32 %v62, %v241
    %v243 = vpop.f32.mrb[0].mxu0
    %244 = vmatprep.mubr.bf16.mxu0 0
    %245 = vmatmul.mubr.bf16.gmra.mrb[0].mxu0 %v117
    %v246 = vpop.f32.mrb[0].mxu0
    %v247 = vadd.f32 %v62, %v246
    %v248 = vpop.f32.mrb[0].mxu0
    %v249 = vpop.f32.mrb[0].mxu0
    %v250 = vadd.f32 %v62, %v249
    %v251 = vpop.f32.mrb[0].mxu0
    %252 = vmatprep.mubr.bf16.mxu0 0
    %253 = vmatmul.mubr.bf16.gmra.mrb[0].mxu0 %v118
    %v254 = vpop.f32.mrb[0].mxu0
    %v255 = vadd.f32 %v62, %v254
    %v256 = vpop.f32.mrb[0].mxu0
    %v257 = vpop.f32.mrb[0].mxu0
    %v258 = vadd.f32 %v62, %v257
    %v259 = vpop.f32.mrb[0].mxu0
    %260 = vmatprep.mubr.bf16.mxu0 0
    %261 = vmatmul.mubr.bf16.gmra.mrb[0].mxu0 %v119
    %v262 = vpop.f32.mrb[0].mxu0
    %v263 = vadd.f32 %v62, %v262
    %v264 = vpop.f32.mrb[0].mxu0
    %v265 = vpop.f32.mrb[0].mxu0
    %v266 = vadd.f32 %v62, %v265
    %v267 = vpop.f32.mrb[0].mxu0
    %268 = vmatprep.mubr.bf16.mxu0 0
    %269 = vmatmul.mubr.bf16.gmra.mrb[0].mxu0 %v120
    %v270 = vpop.f32.mrb[0].mxu0
    %v271 = vadd.f32 %v62, %v270
    %v272 = vpop.f32.mrb[0].mxu0
    %v273 = vpop.f32.mrb[0].mxu0
    %v274 = vadd.f32 %v62, %v273
    %v275 = vpop.f32.mrb[0].mxu0
    %276 = vmatprep.mubr.bf16.mxu0 0
    %277 = vmatmul.mubr.bf16.gmra.mrb[0].mxu0 %v121
    %v278 = vpop.f32.mrb[0].mxu0
    %v279 = vadd.f32 %v62, %v278
    %v280 = vpop.f32.mrb[0].mxu0
    %v281 = vpop.f32.mrb[0].mxu0
    %v282 = vadd.f32 %v62, %v281
    %v283 = vpop.f32.mrb[0].mxu0
    %284 = vmatprep.mubr.bf16.mxu0 0
    %285 = vmatmul.mubr.bf16.gmra.mrb[0].mxu0 %v122
    %v286 = vpop.f32.mrb[0].mxu0
    %v287 = vadd.f32 %v62, %v286
    %v288 = vpop.f32.mrb[0].mxu0
    %v289 = vpop.f32.mrb[0].mxu0
    %v290 = vadd.f32 %v62, %v289
    %v291 = vpop.f32.mrb[0].mxu0
    %292 = vmatprep.mubr.bf16.mxu0 0
    %293 = vmatmul.mubr.bf16.gmra.mrb[0].mxu0 %v123
    %v294 = vpop.f32.mrb[0].mxu0
    %v295 = vadd.f32 %v62, %v294
    %v296 = vpop.f32.mrb[0].mxu0
    %v297 = vpop.f32.mrb[0].mxu0
    %v298 = vadd.f32 %v62, %v297
    %v299 = vpop.f32.mrb[0].mxu0
    %300 = vmatprep.mubr.bf16.mxu0 0
    %301 = vmatmul.mubr.bf16.gmra.mrb[0].mxu0 %v124
    %v302 = vpop.f32.mrb[0].mxu0
    %v303 = vadd.f32 %v62, %v302
    %v304 = vpop.f32.mrb[0].mxu0
    %v305 = vpop.f32.mrb[0].mxu0
    %v306 = vadd.f32 %v62, %v305
    %v307 = vpop.f32.mrb[0].mxu0
    %308 = vmatprep.mubr.bf16.mxu0 0
    %309 = vmatmul.mubr.bf16.gmra.mrb[0].mxu0 %v125
    %v310 = vpop.f32.mrb[0].mxu0
    %v311 = vadd.f32 %v62, %v310
    %v312 = vpop.f32.mrb[0].mxu0
    %v313 = vpop.f32.mrb[0].mxu0
    %v314 = vadd.f32 %v62, %v313
    %v315 = vpop.f32.mrb[0].mxu0
    %316 = vmatprep.mubr.bf16.mxu0 0
    %317 = vmatmul.mubr.bf16.gmra.mrb[0].mxu0 %v126
    %v318 = vpop.f32.mrb[0].mxu0
    %v319 = vadd.f32 %v62, %v318
    %v320 = vpop.f32.mrb[0].mxu0
    %v321 = vpop.f32.mrb[0].mxu0
    %v322 = vpop.f32.mrb[0].mxu0
    %323 = vdwg.mxu0
    %v324 = vmax.f32 %v223, 0.0
    %v325 = vmax.f32 %v226, 0.0
    %v326 = vmax.f32 %v231, 0.0
    %v327 = vmax.f32 %v234, 0.0
    %v328 = vmax.f32 %v239, 0.0
    %v329 = vmax.f32 %v242, 0.0
    %v330 = vmax.f32 %v247, 0.0
    %v331 = vmax.f32 %v250, 0.0
    %v332 = vmax.f32 %v255, 0.0
    %v333 = vmax.f32 %v258, 0.0
    %v334 = vmax.f32 %v263, 0.0
    %v335 = vmax.f32 %v266, 0.0
    %v336 = vmax.f32 %v271, 0.0
    %v337 = vmax.f32 %v274, 0.0
    %v338 = vmax.f32 %v279, 0.0
    %v339 = vmax.f32 %v282, 0.0
    %v340 = vmax.f32 %v287, 0.0
    %v341 = vmax.f32 %v290, 0.0
    %v342 = vmax.f32 %v295, 0.0
    %v343 = vmax.f32 %v298, 0.0
    %v344 = vmax.f32 %v303, 0.0
    %v345 = vmax.f32 %v306, 0.0
    %v346 = vmax.f32 %v311, 0.0
    %v347 = vmax.f32 %v314, 0.0
    %v348 = vmax.f32 %v319, 0.0
    %349 = vst [vmem:[#allocation2] sm:$0xff] %v324
    %350 = vst [vmem:[#allocation2 + $0x8] sm:$0xff] %v325
    %351 = vst [vmem:[#allocation2 + $0x10] sm:$0xff] %v326
    %352 = vst [vmem:[#allocation2 + $0x18] sm:$0xff] %v327
    %353 = vst [vmem:[#allocation2 + $0x20] sm:$0xff] %v328
    %354 = vst [vmem:[#allocation2 + $0x28] sm:$0xff] %v329
    %355 = vst [vmem:[#allocation2 + $0x30] sm:$0xff] %v330
    %356 = vst [vmem:[#allocation2 + $0x38] sm:$0xff] %v331
    %357 = vst [vmem:[#allocation2 + $0x40] sm:$0xff] %v332
    %358 = vst [vmem:[#allocation2 + $0x48] sm:$0xff] %v333
    %359 = vst [vmem:[#allocation2 + $0x50] sm:$0xff] %v334
    %360 = vst [vmem:[#allocation2 + $0x58] sm:$0xff] %v335
    %361 = vst [vmem:[#allocation2 + $0x60] sm:$0xff] %v336
    %362 = vst [vmem:[#allocation2 + $0x68] sm:$0xff] %v337
    %363 = vst [vmem:[#allocation2 + $0x70] sm:$0xff] %v338
    %364 = vst [vmem:[#allocation2 + $0x78] sm:$0xff] %v339
    %365 = vst [vmem:[#allocation2 + $0x80] sm:$0xff] %v340
    %366 = vst [vmem:[#allocation2 + $0x88] sm:$0xff] %v341
    %367 = vst [vmem:[#allocation2 + $0x90] sm:$0xff] %v342
    %368 = vst [vmem:[#allocation2 + $0x98] sm:$0xff] %v343
    %369 = vst [vmem:[#allocation2 + $0xa0] sm:$0xff] %v344
    %370 = vst [vmem:[#allocation2 + $0xa8] sm:$0xff] %v345
    %371 = vst [vmem:[#allocation2 + $0xb0] sm:$0xff] %v346
    %372 = vst [vmem:[#allocation2 + $0xb8] sm:$0xff] %v347
    %373 = vst [vmem:[#allocation2 + $0xc0] sm:$0xff] %v348
    // Predicated region
    $region14: #{node_apply.1} parent=1 // pred_check
      _
    $region15: #{node_apply.1} parent=1 // pred_check_branch
      %375 = sbr.rel (0) target = $region17
    $region16: #{node_apply.1} parent=1 // pred_region
      %s377 = ssub.s32 3200, 3200
      %378 = vsyncadd [#allocation3], %s377
      %s379 = sshll.u32 [#allocation2], 4
      %s380 = int_to_ptr.vmem [resolvable:$true] %s379
      %385 = dma.vmem_to_hbm [thread:$0]  %s380, 3200, %s3, [#allocation3], 128, 128, 8
    $region17: #{node_apply.1} parent=1 // pred_fallthru
      _
    // Predicated region
    $region18: #{node_apply.1} parent=1 // pred_check
      _
    $region19: #{node_apply.1} parent=1 // pred_check_branch
      %387 = sbr.rel (0) target = $region21
    $region20: #{node_apply.1} parent=1 // pred_region
      %388 = dma.done [#allocation3], 3200
    $region21: #{node_apply.1} parent=1 // pred_fallthru
      _
    %389 = vsyncpa [#allocation3], 1

</llo_original>
